<compile_context>
chip_gen: v6e
topology: v6e:2x2x1
jax: 0.10.0
libtpu: 0.0.40
codegen_flags: <defaults>
</compile_context>

<pallas_src>
import jax
import jax.numpy as jnp
from jax import lax
from jax.experimental import pallas as pl
from jax.experimental.pallas import tpu as pltpu

TB_DEFAULT = 256                         # tokens per grid step (multiple of 8)
VMEM_LIMIT_BYTES = 48 * 1024 * 1024      # safe on v7x (64 MiB physical VMEM)
VMEM_HEADROOM_BYTES = 4 * 1024 * 1024


def _round_up(x, m):
    return ((x + m - 1) // m) * m


def _combined_kernel(idx_ref, tbl_ref, o_ref):
    """One-hot gather against a single VMEM-resident combined table.

    idx_ref : (TB, 1)   int32 token indices.
    tbl_ref : (Vpad, d_total) resident combined embedding table.
    o_ref   : (TB, d_total)   output block.
    """
    idx = idx_ref[...]                                   # (TB, 1) int32
    tbl = tbl_ref[...]                                   # (Vpad, d_total)
    tb = idx.shape[0]
    vpad = tbl.shape[0]
    # Row selector; padded / out-of-range indices select nothing (zero row).
    onehot = (idx == lax.broadcasted_iota(jnp.int32, (tb, vpad), 1)).astype(tbl.dtype)
    # Single MXU matmul gives the whole concatenated embedding block at once.
    o_ref[...] = jnp.dot(onehot, tbl,
                         preferred_element_type=jnp.float32).astype(o_ref.dtype)


def _multi_kernel(idx_ref, *refs):
    """Fallback: per-table one-hot matmuls + lane concat (skewed vocab sizes)."""
    n_emb = len(refs) - 1
    table_refs, o_ref = refs[:n_emb], refs[n_emb]
    idx = idx_ref[...]                                   # (TB, 1) int32
    tb = idx.shape[0]
    parts = []
    for e in range(n_emb):
        tbl = table_refs[e][...]                         # (Vpad_e, D_e)
        vpad = tbl.shape[0]
        onehot = (idx == lax.broadcasted_iota(jnp.int32, (tb, vpad), 1)).astype(tbl.dtype)
        parts.append(jnp.dot(onehot, tbl, preferred_element_type=jnp.float32))
    o_ref[...] = jnp.concatenate(parts, axis=-1).astype(o_ref.dtype)


def embedding_combiner(indices, tables, *, tb=TB_DEFAULT):
    """JAX/Pallas equivalent of EmbeddingCombiner.forward.

    indices: int array [B, S] (values < V_i for every table).
    tables : list of [V_i, D_i] arrays, all the same dtype.
    Returns [B, S, sum_i D_i].
    """
    B, S = indices.shape
    T = B * S
    dims = tuple(int(t.shape[1]) for t in tables)
    d_total = sum(dims)
    dtype = tables[0].dtype
    if any(t.dtype != dtype for t in tables):
        # TODO(synk): mixed-dtype embedding tables (promote to a common dtype first).
        raise NotImplementedError("all embedding tables must share a dtype")

    # Token block: large enough to amortize per-step overhead, never larger
    # than the (sublane-rounded) token count.
    tb = max(8, min(_round_up(tb, 8), _round_up(T, 8)))
    T_pad = _round_up(T, tb)

    idx_flat = indices.reshape(T).astype(jnp.int32)
    if T_pad != T:
        idx_flat = jnp.pad(idx_flat, (0, T_pad - T))     # garbage rows sliced off below
    idx2d = idx_flat.reshape(T_pad, 1)

    isize = dtype.itemsize
    budget = VMEM_LIMIT_BYTES - VMEM_HEADROOM_BYTES
    # idx + out blocks are double-buffered by the pipeline.
    block_bytes = 2 * tb * d_total * isize + 2 * tb * 4

    grid = (T_pad // tb,)
    idx_spec = pl.BlockSpec((tb, 1), lambda t: (t, 0))
    out_spec = pl.BlockSpec((tb, d_total), lambda t: (t, 0))
    cparams = pltpu.CompilerParams(
        dimension_semantics=("parallel",),   # independent token blocks; both TCs on v7x
        vmem_limit_bytes=VMEM_LIMIT_BYTES,
    )

    vpad_max = _round_up(max(int(t.shape[0]) for t in tables), 128)
    combined_bytes = 2 * vpad_max * d_total * isize      # conservatively assume 2 buffers

    if combined_bytes + block_bytes <= budget:
        # Fast path: shared vocab padding -> one one-hot, one MXU matmul per block.
        combined = jnp.concatenate(
            [jnp.pad(t, ((0, vpad_max - int(t.shape[0])), (0, 0))) for t in tables],
            axis=-1)                                     # (Vpad_max, d_total)
        out = pl.pallas_call(
            _combined_kernel,
            out_shape=jax.ShapeDtypeStruct((T_pad, d_total), dtype),
            grid_spec=pltpu.PrefetchScalarGridSpec(
                num_scalar_prefetch=0,
                grid=grid,
                in_specs=[idx_spec,
                          pl.BlockSpec((vpad_max, d_total), lambda t: (0, 0))],
                out_specs=out_spec,
            ),
            compiler_params=cparams,
        )(idx2d, combined)
    else:
        # Fallback: per-table vocab padding (smaller resident footprint when
        # vocab sizes are very skewed), one matmul per table + in-kernel concat.
        tables_p = []
        for t in tables:
            v = int(t.shape[0])
            vp = _round_up(v, 128)
            tables_p.append(jnp.pad(t, ((0, vp - v), (0, 0))) if vp != v else t)
        per_table_bytes = 2 * sum(int(t.shape[0]) * int(t.shape[1]) * isize
                                  for t in tables_p)
        if per_table_bytes + block_bytes > budget:
            # TODO(synk): huge-vocab path (double-buffered per-row async-copy
            # gather from HBM) for table sets that do not fit in VMEM.
            raise NotImplementedError(
                "embedding tables too large for resident-VMEM fast path")
        out = pl.pallas_call(
            _multi_kernel,
            out_shape=jax.ShapeDtypeStruct((T_pad, d_total), dtype),
            grid_spec=pltpu.PrefetchScalarGridSpec(
                num_scalar_prefetch=0,
                grid=grid,
                in_specs=[idx_spec]
                         + [pl.BlockSpec(tp.shape, lambda t: (0, 0))
                            for tp in tables_p],
                out_specs=out_spec,
            ),
            compiler_params=cparams,
        )(idx2d, *tables_p)

    return out[:T].reshape(B, S, d_total)


if __name__ == "__main__":
    key = jax.random.PRNGKey(0)
    k_idx, k_e1, k_e2 = jax.random.split(key, 3)

    # Two "nn.Embedding" tables combined by EmbeddingCombiner.
    B, S = 2, 8
    V1, D1 = 40, 32
    V2, D2 = 48, 64

    table1 = jax.random.normal(k_e1, (V1, D1), dtype=jnp.float32)
    table2 = jax.random.normal(k_e2, (V2, D2), dtype=jnp.float32)
    indices = jax.random.randint(k_idx, (B, S), 0, min(V1, V2), dtype=jnp.int32)

    out = embedding_combiner(indices, [table1, table2])
    out = jax.block_until_ready(out)

    # Pure-JAX reference of torch.cat([e(input) for e in embeddings], dim=-1)
    ref = jnp.concatenate([table1[indices], table2[indices]], axis=-1)

    assert out.shape == (B, S, D1 + D2), out.shape
    # One-hot selection is exact in f32; tolerance is just MXU-pass headroom.
    # Any wrong-row gather would differ by O(1) and still be caught.
    assert jnp.allclose(out, ref, rtol=1e-2, atol=1e-3), "mismatch vs reference embedding lookup"
    print("KERNEL_OK")
</pallas_src>

<mosaic_0001>
module attributes {stable_mosaic.version = 11 : i64} {
  func.func @_combined_kernel(%arg0: i32, %arg1: memref<16x1xi32, #tpu.memory_space<vmem>>, %arg2: memref<128x96xf32, #tpu.memory_space<vmem>>, %arg3: memref<16x96xf32, #tpu.memory_space<vmem>>) attributes {dimension_semantics = [#tpu.dimension_semantics<parallel>], iteration_bounds = array<i64: 1>, scalar_prefetch = 0 : i64, scratch_operands = 0 : i64, tpu.core_type = #tpu.core_type<tc>, window_params = [{transform_indices = @transform_0, window_bounds = array<i64: 16, 1>}, {pipeline_mode = #tpu.pipeline_mode<synchronous>, transform_indices = @transform_1, window_bounds = array<i64: 128, 96>}, {transform_indices = @transform_2, window_bounds = array<i64: 16, 96>}]} {
    %c0 = arith.constant 0 : index
    %c0_0 = arith.constant 0 : index
    %0 = vector.load %arg1[%c0, %c0_0] : memref<16x1xi32, #tpu.memory_space<vmem>>, vector<16x1xi32>
    %c0_1 = arith.constant 0 : index
    %c0_2 = arith.constant 0 : index
    %1 = vector.load %arg2[%c0_1, %c0_2] : memref<128x96xf32, #tpu.memory_space<vmem>>, vector<128x96xf32>
    %2 = tpu.iota {dimensions = array<i32: 1>} : vector<16x128xi32>
    %3 = vector.broadcast %0 : vector<16x1xi32> to vector<16x128xi32>
    %4 = arith.cmpi eq, %3, %2 : vector<16x128xi32>
    %5 = arith.extui %4 : vector<16x128xi1> to vector<16x128xi32>
    %6 = arith.sitofp %5 : vector<16x128xi32> to vector<16x128xf32>
    %cst = arith.constant dense<0.000000e+00> : vector<16x96xf32>
    %7 = tpu.matmul %6, %1, %cst {dimension_numbers = #tpu.dot_dimension_numbers<[1], [0], [0], [1], [0, 0, 1, 1], [], []>} : vector<16x128xf32>, vector<128x96xf32>, vector<16x96xf32> -> vector<16x96xf32>
    %c0_3 = arith.constant 0 : index
    %c0_4 = arith.constant 0 : index
    %8 = vector.load %arg3[%c0_3, %c0_4] : memref<16x96xf32, #tpu.memory_space<vmem>>, vector<16x96xf32>
    tpu.vector_store %arg3[%c0_3, %c0_4], %7 {strides = array<i32>} : memref<16x96xf32, #tpu.memory_space<vmem>>, vector<16x96xf32>,
    return
  }
  func.func @transform_0(%arg0: i32) -> (i32, i32) {
    %c0_i32 = arith.constant 0 : i32
    %c0_i32_0 = arith.constant 0 : i32
    return %arg0, %c0_i32 : i32, i32
  }
  func.func @transform_1(%arg0: i32) -> (i32, i32) {
    %c0_i32 = arith.constant 0 : i32
    %c0_i32_0 = arith.constant 0 : i32
    %c0_i32_1 = arith.constant 0 : i32
    return %c0_i32, %c0_i32_0 : i32, i32
  }
  func.func @transform_2(%arg0: i32) -> (i32, i32) {
    %c0_i32 = arith.constant 0 : i32
    %c0_i32_0 = arith.constant 0 : i32
    return %arg0, %c0_i32 : i32, i32
  }
}

</mosaic_0001>

<llo_original>
// kernel: tpu_custom_call.1
$region0: #{tpu_custom_call.1}
  #allocation0 [shape = 'u32[]', space=smem, size = 0x4, offset = 0x4, fixed_abs, tag = 'smem constant byte address 0x4 - core index']
  #allocation1 [shape = 'u32[144,128]{1,0:T(1,128)}', space=vmem, size = 0x12000, scoped, tag = 'internal scratch']
  %s0 = inlined_call_operand.vmem [shape: s32[16,1], index: 0, kind: input, shape index: {}]
  %s1 = inlined_call_operand.vmem [shape: f32[128,96], index: 1, kind: input, shape index: {}]
  %s2 = inlined_call_operand.hbm [shape: f32[16,96], index: 2, kind: output, shape index: {}]
  %s3 = sld [smem:[#allocation0]]
  $region18: #{tpu_custom_call.1} parent=0
    _
  %s5 = ssub.s32 1, %s3
  %s6 = scalar_select 0, %s5, %s3
  $region1: #{tpu_custom_call.1} parent=0
    #allocation2 [shape = 'u8[8192]{0}', space=vmem, size = 0x2000, scoped, tag = 'output window, operand 0, single buffered']
    #allocation3 [shape = 's32[1]{0}', space=sflag, size = 0x4, scoped, tag = 'scoped memory for tpu_custom_call.1']
    %7 = vsyncpa [#allocation3], 0
    // Predicated region
    $region2: #{tpu_custom_call.1} parent=1 // pred_check
      _
    $region3: #{tpu_custom_call.1} parent=1 // pred_check_branch
      %9 = sbr.rel (0) target = $region5
    $region4: #{tpu_custom_call.1} parent=1 // pred_region
      _
    $region5: #{tpu_custom_call.1} parent=1 // pred_fallthru
      _
    // Predicated region
    $region6: #{tpu_custom_call.1} parent=1 // pred_check
      _
    $region7: #{tpu_custom_call.1} parent=1 // pred_check_branch
      %11 = sbr.rel (0) target = $region9
    $region8: #{tpu_custom_call.1} parent=1 // pred_region
      _
    $region9: #{tpu_custom_call.1} parent=1 // pred_fallthru
      _
    %v12 = vld [vmem:[%s0] sm:$0xff]
    %v13 = vld [vmem:[%s0 + $0x8] sm:$0xff]
    %v14 = vld [vmem:[%s1] sm:$0xff]
    %v15 = vld [vmem:[%s1 + $0x8] sm:$0xff]
    %v16 = vld [vmem:[%s1 + $0x10] sm:$0xff]
    %v17 = vld [vmem:[%s1 + $0x18] sm:$0xff]
    %v18 = vld [vmem:[%s1 + $0x20] sm:$0xff]
    %v19 = vld [vmem:[%s1 + $0x28] sm:$0xff]
    %v20 = vld [vmem:[%s1 + $0x30] sm:$0xff]
    %v21 = vld [vmem:[%s1 + $0x38] sm:$0xff]
    %v22 = vld [vmem:[%s1 + $0x40] sm:$0xff]
    %v23 = vld [vmem:[%s1 + $0x48] sm:$0xff]
    %v24 = vld [vmem:[%s1 + $0x50] sm:$0xff]
    %v25 = vld [vmem:[%s1 + $0x58] sm:$0xff]
    %v26 = vld [vmem:[%s1 + $0x60] sm:$0xff]
    %v27 = vld [vmem:[%s1 + $0x68] sm:$0xff]
    %v28 = vld [vmem:[%s1 + $0x70] sm:$0xff]
    %v29 = vld [vmem:[%s1 + $0x78] sm:$0xff]
    %v30 = vlaneseq
    %v31 = vand.u32 %v30, 127
    %32 = vset.pattern.permute.xlu0 0
    %33 = vperm.xlu0 %32, %v12
    %v34 = vpop.permute.xlu0 %33
    %35 = vset.pattern.permute.xlu0 0
    %36 = vperm.xlu0 %35, %v13
    %v37 = vpop.permute.xlu0 %36
    %vm38 = vcmp.eq.s32.totalorder %v34, %v31
    %vm39 = vcmp.eq.s32.totalorder %v37, %v31
    %v40 = vsel %vm38, 1, 0
    %v41 = vsel %vm39, 1, 0
    %v42 = vcvt.s32.f32 %v40
    %v43 = vcvt.s32.f32 %v41
    %44 = vmatprep.subr.mxu0 0.0
    %45 = vmatpush1.msra.mxu0 %v29
    %46 = vmatprep.subr.mxu0 0.0
    %47 = vmatpush1.msra.mxu0 %v28
    %48 = vmatprep.subr.mxu0 0.0
    %49 = vmatpush1.msra.mxu0 %v27
    %50 = vmatprep.subr.mxu0 0.0
    %51 = vmatpush1.msra.mxu0 %v26
    %52 = vmatprep.subr.mxu0 0.0
    %53 = vmatpush1.msra.mxu0 %v25
    %54 = vmatprep.subr.mxu0 0.0
    %55 = vmatpush1.msra.mxu0 %v24
    %56 = vmatprep.subr.mxu0 0.0
    %57 = vmatpush1.msra.mxu0 %v23
    %58 = vmatprep.subr.mxu0 0.0
    %59 = vmatpush1.msra.mxu0 %v22
    %60 = vmatprep.subr.mxu0 0.0
    %61 = vmatpush1.msra.mxu0 %v21
    %62 = vmatprep.subr.mxu0 0.0
    %63 = vmatpush1.msra.mxu0 %v20
    %64 = vmatprep.subr.mxu0 0.0
    %65 = vmatpush1.msra.mxu0 %v19
    %66 = vmatprep.subr.mxu0 0.0
    %67 = vmatpush1.msra.mxu0 %v18
    %68 = vmatprep.subr.mxu0 0.0
    %69 = vmatpush1.msra.mxu0 %v17
    %70 = vmatprep.subr.mxu0 0.0
    %71 = vmatpush1.msra.mxu0 %v16
    %72 = vmatprep.subr.mxu0 0.0
    %73 = vmatpush1.msra.mxu0 %v15
    %74 = vmatprep.subr.mxu0 0.0
    %75 = vmatpush1.msra.mxu0 %v14
    %76 = vmatprep.subr.mxu0 0.0
    %77 = vmatpush2.msra.mxu0 0.0
    %78 = vmatprep.subr.mxu0 0.0
    %79 = vmatpush2.msra.mxu0 0.0
    %80 = vmatprep.subr.mxu0 0.0
    %81 = vmatpush2.msra.mxu0 0.0
    %82 = vmatprep.subr.mxu0 0.0
    %83 = vmatpush2.msra.mxu0 0.0
    %84 = vmatprep.subr.mxu0 0.0
    %85 = vmatpush2.msra.mxu0 0.0
    %86 = vmatprep.subr.mxu0 0.0
    %87 = vmatpush2.msra.mxu0 0.0
    %88 = vmatprep.subr.mxu0 0.0
    %89 = vmatpush2.msra.mxu0 0.0
    %90 = vmatprep.subr.mxu0 0.0
    %91 = vmatpush2.msra.mxu0 0.0
    %92 = vmatprep.subr.mxu0 0.0
    %93 = vmatpush2.msra.mxu0 0.0
    %94 = vmatprep.subr.mxu0 0.0
    %95 = vmatpush2.msra.mxu0 0.0
    %96 = vmatprep.subr.mxu0 0.0
    %97 = vmatpush2.msra.mxu0 0.0
    %98 = vmatprep.subr.mxu0 0.0
    %99 = vmatpush2.msra.mxu0 0.0
    %100 = vmatprep.subr.mxu0 0.0
    %101 = vmatpush2.msra.mxu0 0.0
    %102 = vmatprep.subr.mxu0 0.0
    %103 = vmatpush2.msra.mxu0 0.0
    %104 = vmatprep.subr.mxu0 0.0
    %105 = vmatpush2.msra.mxu0 0.0
    %106 = vmatprep.subr.mxu0 0.0
    %107 = vmatpush2.msra.mxu0 0.0
    %108 = vmatprep.mubr.f32.mxu0 0.0
    %109 = vmatmul.mubr.f32.gmra.mxu0 %v42
    %v110 = vpop.f32.mrf.mxu0
    %v111 = vadd.f32 0.0, %v110
    %v112 = vpop.f32.mrf.mxu0
    %113 = vmatprep.mubr.f32.mxu0 0.0
    %114 = vmatmul.mubr.f32.gmra.mxu0 %v43
    %v115 = vpop.f32.mrf.mxu0
    %v116 = vadd.f32 0.0, %v115
    %v117 = vpop.f32.mrf.mxu0
    %118 = vdwg.mxu0
    %vm119 = vcmask 785408
    %120 = vst.msk [vmem:[#allocation2] sm:$0xff] %vm119, %v111
    %121 = vst.msk [vmem:[#allocation2 + $0x8] sm:$0xff] %vm119, %v116
    // Predicated region
    $region10: #{tpu_custom_call.1} parent=1 // pred_check
      _
    $region11: #{tpu_custom_call.1} parent=1 // pred_check_branch
      %123 = sbr.rel (0) target = $region13
    $region12: #{tpu_custom_call.1} parent=1 // pred_region
      %s125 = ssub.s32 256, 256
      %126 = vsyncadd [#allocation3], %s125
      %s127 = sshll.u32 [#allocation2], 4
      %s128 = int_to_ptr.vmem [resolvable:$true] %s127
      %133 = dma.vmem_to_hbm [thread:$0]  %s128, 256, %s2, [#allocation3], 128, 128, 8
    $region13: #{tpu_custom_call.1} parent=1 // pred_fallthru
      _
    // Predicated region
    $region14: #{tpu_custom_call.1} parent=1 // pred_check
      _
    $region15: #{tpu_custom_call.1} parent=1 // pred_check_branch
      %135 = sbr.rel (0) target = $region17
    $region16: #{tpu_custom_call.1} parent=1 // pred_region
      %136 = dma.done [#allocation3], 256
    $region17: #{tpu_custom_call.1} parent=1 // pred_fallthru
      _
    %137 = vsyncpa [#allocation3], 1

</llo_original>
